<compile_context>
chip_gen: v7x
topology: tpu7x:2x2x1
jax: 0.10.0
libtpu: 0.0.40
codegen_flags: <defaults>
</compile_context>

<pallas_src>
import functools

import jax
import jax.numpy as jnp
from jax.experimental import pallas as pl
from jax.experimental.pallas import tpu as pltpu

_LANES = 128


def _round_up(v, m):
    return -(-v // m) * m


def _seg_align(dtype):
    """Sublane-tile row alignment for slab segments: 8 (f32), 16 (bf16), 32 (i8)."""
    return 8 * (4 // jnp.dtype(dtype).itemsize)


def _is_v7x():
    try:
        return "v7" in jax.devices()[0].device_kind.lower()
    except Exception:
        return True  # unknown chip: keeping >=2 steps is harmless


def _select_batch_tiling(B, tb_max, min_steps):
    """Lane-aligned batch tile: <= tb_max, ~ceil(B/n_steps) to minimize padding,
    and >= min_steps grid steps when there is enough work (v7x dual-TC)."""
    B_lane = _round_up(max(B, 1), _LANES)
    n_steps = pl.cdiv(B_lane, tb_max)
    if B_lane >= min_steps * _LANES:
        n_steps = max(n_steps, min_steps)
    TB = min(_round_up(pl.cdiv(B_lane, n_steps), _LANES), tb_max)
    n_steps = pl.cdiv(B_lane, TB)
    return TB, n_steps, TB * n_steps


def dueling_net_kernel(p_ref, xt_ref, out_ref, *, n_in, n_hidden, n_out,
                       w1_off, w2_off, wh_off, b1_off, b2_off, bh_off):
    cdt = p_ref.dtype
    xt = xt_ref[...]                                        # [n_in, TB] lane-dense

    # Static views into the packed, VMEM-resident parameter slab.
    w1t = p_ref[w1_off:w1_off + n_hidden, 0:n_in]           # [n_hidden, n_in]
    w2t = p_ref[w2_off:w2_off + n_hidden, 0:n_hidden]       # [n_hidden, n_hidden]
    wht = p_ref[wh_off:wh_off + n_out + 1, 0:n_hidden]      # fused adv|val head (T)
    b1 = p_ref[b1_off:b1_off + n_hidden, 0:1]               # column biases [*, 1]
    b2 = p_ref[b2_off:b2_off + n_hidden, 0:1]
    bh = p_ref[bh_off:bh_off + n_out + 1, 0:1]

    # fc1 -> relu, fc2 -> relu.  Batch on the MXU lane axis, f32 accumulation.
    h1 = jnp.maximum(jnp.dot(w1t, xt, preferred_element_type=jnp.float32) + b1, 0.0)
    h2 = jnp.maximum(
        jnp.dot(w2t, h1.astype(cdt), preferred_element_type=jnp.float32) + b2, 0.0)

    # Single fused head matmul: rows [0:n_out] = advantage, row n_out = value.
    heads = jnp.dot(wht, h2.astype(cdt), preferred_element_type=jnp.float32) + bh
    adv = heads[0:n_out, :]                                  # [n_out, TB]
    val = heads[n_out:n_out + 1, :]                          # [1, TB]

    # Dueling combination: val + adv - mean_a(adv)   (mean as sum * const).
    adv_mean = jnp.sum(adv, axis=0, keepdims=True) * (1.0 / n_out)
    out_ref[...] = (val + adv - adv_mean).astype(out_ref.dtype)


def pack_params(params, n_in, n_hidden, n_out, dtype=jnp.float32):
    """Transpose weights, fuse adv/value heads, pack everything into one
    lane-dense [rows, 128] slab with sublane-tile-aligned segment offsets."""
    assert n_in <= _LANES and n_hidden <= _LANES and (n_out + 1) <= _LANES
    w1, b1, w2, b2, wa, ba, wv, bv = params
    wht = jnp.concatenate([wa, wv], axis=1).T               # [n_out+1, n_hidden]
    bht = jnp.concatenate([ba, bv], axis=1).T               # [n_out+1, 1]

    al = _seg_align(dtype)                                   # 8 f32 / 16 bf16 / 32 i8
    w1_off = 0
    w2_off = w1_off + _round_up(n_hidden, al)
    wh_off = w2_off + _round_up(n_hidden, al)
    b1_off = wh_off + _round_up(n_out + 1, al)
    b2_off = b1_off + _round_up(n_hidden, al)
    bh_off = b2_off + _round_up(n_hidden, al)
    rows = bh_off + _round_up(n_out + 1, al)

    slab = jnp.zeros((rows, _LANES), dtype)
    slab = slab.at[w1_off:w1_off + n_hidden, 0:n_in].set(w1.T.astype(dtype))
    slab = slab.at[w2_off:w2_off + n_hidden, 0:n_hidden].set(w2.T.astype(dtype))
    slab = slab.at[wh_off:wh_off + n_out + 1, 0:n_hidden].set(wht.astype(dtype))
    slab = slab.at[b1_off:b1_off + n_hidden, 0:1].set(b1.T.astype(dtype))
    slab = slab.at[b2_off:b2_off + n_hidden, 0:1].set(b2.T.astype(dtype))
    slab = slab.at[bh_off:bh_off + n_out + 1, 0:1].set(bht.astype(dtype))

    meta = dict(w1_off=w1_off, w2_off=w2_off, wh_off=wh_off,
                b1_off=b1_off, b2_off=b2_off, bh_off=bh_off)
    return slab, meta


def dueling_net_forward(x, slab, meta, *, n_in, n_hidden, n_out,
                        tb=2048, min_steps=None):
    """Batched forward.  Batch lives on the 128-lane axis; weights stay
    VMEM-resident; batch tiles stream through a 1-D 'parallel' grid."""
    B = x.shape[0]
    if min_steps is None:
        # Only shrink the tile to create extra steps on dual-TC chips (v7x);
        # on v5e/v6e "parallel" is a no-op, so keep one big tile when possible.
        min_steps = 2 if _is_v7x() else 1
    TB, n_steps, B_pad = _select_batch_tiling(B, tb, min_steps)

    # Lane-dense, compute-dtype input [n_in, B_pad].  Casting here (not inside
    # the kernel) halves the streamed bytes on the bf16 path.
    xt = jnp.pad(x.astype(slab.dtype).T, ((0, 0), (0, B_pad - B)))

    kernel = functools.partial(
        dueling_net_kernel, n_in=n_in, n_hidden=n_hidden, n_out=n_out, **meta)

    # 3-deep buffering on the streamed input once the grid is deep enough:
    # per-step DMAs are tiny and latency-bound, so an extra buffer hides DMA
    # issue latency behind the short compute at negligible VMEM cost.
    if n_steps >= 3:
        x_spec = pl.BlockSpec((n_in, TB), lambda i: (0, i),
                              pipeline_mode=pl.Buffered(3))
    else:
        x_spec = pl.BlockSpec((n_in, TB), lambda i: (0, i))

    outt = pl.pallas_call(
        kernel,
        out_shape=jax.ShapeDtypeStruct((n_out, B_pad), jnp.float32),
        grid=(n_steps,),
        in_specs=[
            # Packed params: same block every step -> stays resident in VMEM.
            pl.BlockSpec(slab.shape, lambda i: (0, 0)),
            # Lane-dense batch tile of the transposed input states.
            x_spec,
        ],
        out_specs=pl.BlockSpec((n_out, TB), lambda i: (0, i)),
        compiler_params=pltpu.CompilerParams(
            dimension_semantics=("parallel",)),
    )(slab, xt)

    return outt[:, :B].T


def init_params(key, n_in, n_hidden, n_out):
    """Deterministic init mimicking nn.Linear's U(-1/sqrt(fan_in), 1/sqrt(fan_in))."""
    keys = jax.random.split(key, 8)

    def lin(kw, kb, fan_in, fan_out):
        bound = 1.0 / jnp.sqrt(jnp.float32(fan_in))
        w = jax.random.uniform(kw, (fan_in, fan_out), jnp.float32, -bound, bound)
        b = jax.random.uniform(kb, (1, fan_out), jnp.float32, -bound, bound)
        return w, b

    w1, b1 = lin(keys[0], keys[1], n_in, n_hidden)
    w2, b2 = lin(keys[2], keys[3], n_hidden, n_hidden)
    wa, ba = lin(keys[4], keys[5], n_hidden, n_out)
    wv, bv = lin(keys[6], keys[7], n_hidden, 1)
    return (w1, b1, w2, b2, wa, ba, wv, bv)


def reference_forward(x, params):
    """Pure-JAX reference matching the PyTorch module."""
    (w1, b1, w2, b2, wa, ba, wv, bv) = params
    h1 = jnp.maximum(x @ w1 + b1, 0.0)
    h2 = jnp.maximum(h1 @ w2 + b2, 0.0)
    adv = h2 @ wa + ba
    val = h2 @ wv + bv
    return val + adv - jnp.mean(adv, axis=1, keepdims=True)


if __name__ == "__main__":
    key = jax.random.PRNGKey(0)
    k_p, k_x, k_x2 = jax.random.split(key, 3)

    n_in, n_hidden, n_out = 4, 32, 2          # CartPole: 4 state dims, 2 actions
    params = init_params(k_p, n_in, n_hidden, n_out)

    # ---- f32 slab: exact check against the f32 reference -------------------
    slab, meta = pack_params(params, n_in, n_hidden, n_out, dtype=jnp.float32)

    B = 8
    x = jax.random.normal(k_x, (B, n_in), jnp.float32)
    out = dueling_net_forward(x, slab, meta,
                              n_in=n_in, n_hidden=n_hidden, n_out=n_out)
    out = jax.block_until_ready(out)
    ref = reference_forward(x, params)
    assert out.shape == (B, n_out)
    assert jnp.allclose(out, ref, atol=1e-5, rtol=1e-5)

    # Larger, non-tile-multiple batch: exercises the multi-step "parallel"
    # grid, remainder padding and the Buffered(3) streamed-input path
    # (tb=256 -> 4 grid steps here).
    B2 = 1000
    x2 = jax.random.normal(k_x2, (B2, n_in), jnp.float32)
    out2 = dueling_net_forward(x2, slab, meta, n_in=n_in, n_hidden=n_hidden,
                               n_out=n_out, tb=256)
    out2 = jax.block_until_ready(out2)
    ref2 = reference_forward(x2, params)
    assert out2.shape == (B2, n_out)
    assert jnp.allclose(out2, ref2, atol=1e-5, rtol=1e-5)

    # ---- bf16 slab + bf16 streamed x (large-batch v6e/v7x bandwidth lever) --
    # Biases live in the bf16 slab too, so compare with a loose tolerance.
    slab16, meta16 = pack_params(params, n_in, n_hidden, n_out,
                                 dtype=jnp.bfloat16)
    out3 = dueling_net_forward(x2, slab16, meta16, n_in=n_in,
                               n_hidden=n_hidden, n_out=n_out)
    out3 = jax.block_until_ready(out3)
    assert out3.shape == (B2, n_out)
    assert jnp.allclose(out3, ref2, atol=1e-1, rtol=1e-1)

    print("KERNEL_OK")
</pallas_src>

<mosaic_0001>
module attributes {stable_mosaic.version = 11 : i64} {
  func.func @dueling_net_kernel(%arg0: i32, %arg1: memref<144x128xf32, #tpu.memory_space<vmem>>, %arg2: memref<4x128xf32, #tpu.memory_space<vmem>>, %arg3: memref<2x128xf32, #tpu.memory_space<vmem>>) attributes {dimension_semantics = [#tpu.dimension_semantics<parallel>], iteration_bounds = array<i64: 1>, scalar_prefetch = 0 : i64, scratch_operands = 0 : i64, tpu.core_type = #tpu.core_type<tc>, window_params = [{pipeline_mode = #tpu.pipeline_mode<synchronous>, transform_indices = @transform_0, window_bounds = array<i64: 144, 128>}, {transform_indices = @transform_1, window_bounds = array<i64: 4, 128>}, {transform_indices = @transform_2, window_bounds = array<i64: 2, 128>}]} {
    %c0 = arith.constant 0 : index
    %c0_0 = arith.constant 0 : index
    %0 = vector.load %arg2[%c0, %c0_0] : memref<4x128xf32, #tpu.memory_space<vmem>>, vector<4x128xf32>
    %c0_1 = arith.constant 0 : index
    %c0_2 = arith.constant 0 : index
    %1 = vector.load %arg1[%c0_1, %c0_2] : memref<144x128xf32, #tpu.memory_space<vmem>>, vector<32x4xf32>
    %c32 = arith.constant 32 : index
    %c0_3 = arith.constant 0 : index
    %2 = vector.load %arg1[%c32, %c0_3] : memref<144x128xf32, #tpu.memory_space<vmem>>, vector<32x32xf32>
    %c64 = arith.constant 64 : index
    %c0_4 = arith.constant 0 : index
    %3 = vector.load %arg1[%c64, %c0_4] : memref<144x128xf32, #tpu.memory_space<vmem>>, vector<3x32xf32>
    %c72 = arith.constant 72 : index
    %c0_5 = arith.constant 0 : index
    %4 = vector.load %arg1[%c72, %c0_5] : memref<144x128xf32, #tpu.memory_space<vmem>>, vector<32x1xf32>
    %c104 = arith.constant 104 : index
    %c0_6 = arith.constant 0 : index
    %5 = vector.load %arg1[%c104, %c0_6] : memref<144x128xf32, #tpu.memory_space<vmem>>, vector<32x1xf32>
    %c136 = arith.constant 136 : index
    %c0_7 = arith.constant 0 : index
    %6 = vector.load %arg1[%c136, %c0_7] : memref<144x128xf32, #tpu.memory_space<vmem>>, vector<3x1xf32>
    %cst = arith.constant dense<0.000000e+00> : vector<32x128xf32>
    %7 = tpu.matmul %1, %0, %cst {dimension_numbers = #tpu.dot_dimension_numbers<[1], [0], [0], [1], [0, 0, 1, 1], [], []>} : vector<32x4xf32>, vector<4x128xf32>, vector<32x128xf32> -> vector<32x128xf32>
    %8 = vector.broadcast %4 : vector<32x1xf32> to vector<32x128xf32>
    %9 = arith.addf %7, %8 : vector<32x128xf32>
    %cst_8 = arith.constant 0.000000e+00 : f32
    %10 = vector.broadcast %cst_8 : f32 to vector<32x128xf32>
    %11 = arith.maximumf %9, %10 : vector<32x128xf32>
    %cst_9 = arith.constant dense<0.000000e+00> : vector<32x128xf32>
    %12 = tpu.matmul %2, %11, %cst_9 {dimension_numbers = #tpu.dot_dimension_numbers<[1], [0], [0], [1], [0, 0, 1, 1], [], []>} : vector<32x32xf32>, vector<32x128xf32>, vector<32x128xf32> -> vector<32x128xf32>
    %13 = vector.broadcast %5 : vector<32x1xf32> to vector<32x128xf32>
    %14 = arith.addf %12, %13 : vector<32x128xf32>
    %cst_10 = arith.constant 0.000000e+00 : f32
    %15 = vector.broadcast %cst_10 : f32 to vector<32x128xf32>
    %16 = arith.maximumf %14, %15 : vector<32x128xf32>
    %cst_11 = arith.constant dense<0.000000e+00> : vector<3x128xf32>
    %17 = tpu.matmul %3, %16, %cst_11 {dimension_numbers = #tpu.dot_dimension_numbers<[1], [0], [0], [1], [0, 0, 1, 1], [], []>} : vector<3x32xf32>, vector<32x128xf32>, vector<3x128xf32> -> vector<3x128xf32>
    %18 = vector.broadcast %6 : vector<3x1xf32> to vector<3x128xf32>
    %19 = arith.addf %17, %18 : vector<3x128xf32>
    %20 = vector.extract_strided_slice %19 {offsets = [0, 0], sizes = [2, 128], strides = [1, 1]} : vector<3x128xf32> to vector<2x128xf32>
    %21 = vector.extract_strided_slice %19 {offsets = [2, 0], sizes = [1, 128], strides = [1, 1]} : vector<3x128xf32> to vector<1x128xf32>
    %cst_12 = arith.constant dense<0.000000e+00> : vector<128xf32>
    %22 = vector.multi_reduction <add>, %20, %cst_12 [0] : vector<2x128xf32> to vector<128xf32>
    %23 = vector.shape_cast %22 : vector<128xf32> to vector<1x128xf32>
    %cst_13 = arith.constant 5.000000e-01 : f32
    %24 = vector.broadcast %cst_13 : f32 to vector<1x128xf32>
    %25 = arith.mulf %23, %24 : vector<1x128xf32>
    %26 = vector.broadcast %21 : vector<1x128xf32> to vector<2x128xf32>
    %27 = arith.addf %26, %20 : vector<2x128xf32>
    %28 = vector.broadcast %25 : vector<1x128xf32> to vector<2x128xf32>
    %29 = arith.subf %27, %28 : vector<2x128xf32>
    %c0_14 = arith.constant 0 : index
    %c0_15 = arith.constant 0 : index
    %30 = vector.load %arg3[%c0_14, %c0_15] : memref<2x128xf32, #tpu.memory_space<vmem>>, vector<2x128xf32>
    tpu.vector_store %arg3[%c0_14, %c0_15], %29 {strides = array<i32>} : memref<2x128xf32, #tpu.memory_space<vmem>>, vector<2x128xf32>,
    return
  }
  func.func @transform_0(%arg0: i32) -> (i32, i32) {
    %c0_i32 = arith.constant 0 : i32
    %c0_i32_0 = arith.constant 0 : i32
    %c0_i32_1 = arith.constant 0 : i32
    return %c0_i32, %c0_i32_0 : i32, i32
  }
  func.func @transform_1(%arg0: i32) -> (i32, i32) {
    %c0_i32 = arith.constant 0 : i32
    %c0_i32_0 = arith.constant 0 : i32
    return %c0_i32, %arg0 : i32, i32
  }
  func.func @transform_2(%arg0: i32) -> (i32, i32) {
    %c0_i32 = arith.constant 0 : i32
    %c0_i32_0 = arith.constant 0 : i32
    return %c0_i32, %arg0 : i32, i32
  }
}

</mosaic_0001>

<llo_original>
// kernel: tpu_custom_call.1
$region0: #{tpu_custom_call.1}
  #allocation0 [shape = 'u32[]', space=smem, size = 0x4, offset = 0x4, fixed_abs, tag = 'smem constant byte address 0x4 - core index']
  #allocation1 [shape = 'u32[144,128]{1,0:T(1,128)}', space=vmem, size = 0x12000, scoped, tag = 'internal scratch']
  %s0 = inlined_call_operand.hbm [shape: f32[144,128], index: 0, kind: input, shape index: {}]
  %s1 = inlined_call_operand.hbm [shape: f32[4,128], index: 1, kind: input, shape index: {}]
  %s2 = inlined_call_operand.hbm [shape: f32[2,128], index: 2, kind: output, shape index: {}]
  %s3 = sld [smem:[#allocation0]]
  $region26: #{tpu_custom_call.1} parent=0
    _
  %s5 = ssub.s32 1, %s3
  %s6 = scalar_select 0, %s5, %s3
  $region1: #{tpu_custom_call.1} parent=0
    #allocation2 [shape = 'u8[73728]{0}', space=vmem, size = 0x12000, scoped, tag = 'input window, operand 0, single buffered']
    #allocation3 [shape = 's32[1]{0}', space=sflag, size = 0x4, scoped, tag = 'scoped memory for tpu_custom_call.1']
    #allocation4 [shape = 's32[1]{0}', space=sflag, size = 0x4, scoped, tag = 'scoped memory for tpu_custom_call.1']
    #allocation5 [shape = 'u8[2048]{0}', space=vmem, size = 0x800, scoped, tag = 'input window, operand 1, single buffered']
    #allocation6 [shape = 's32[1]{0}', space=sflag, size = 0x4, scoped, tag = 'scoped memory for tpu_custom_call.1']
    #allocation7 [shape = 'u8[1024]{0}', space=vmem, size = 0x400, scoped, tag = 'output window, operand 0, single buffered']
    %7 = vsyncpa [#allocation3], 0
    %8 = vsyncpa [#allocation6], 0
    %9 = vsyncpa [#allocation4], 0
    // Predicated region
    $region2: #{tpu_custom_call.1} parent=1 // pred_check
      _
    $region3: #{tpu_custom_call.1} parent=1 // pred_check_branch
      %11 = sbr.rel (0) target = $region5
    $region4: #{tpu_custom_call.1} parent=1 // pred_region
      %s13 = ssub.s32 2304, 2304
      %14 = vsyncadd [#allocation3], %s13
      %s15 = sshll.u32 [#allocation2], 4
      %s16 = int_to_ptr.vmem [resolvable:$true] %s15
      %21 = dma.hbm_to_vmem [thread:$0]  %s0, 2304, %s16, [#allocation3], 128, 128, 8
    $region5: #{tpu_custom_call.1} parent=1 // pred_fallthru
      _
    // Predicated region
    $region6: #{tpu_custom_call.1} parent=1 // pred_check
      _
    $region7: #{tpu_custom_call.1} parent=1 // pred_check_branch
      %23 = sbr.rel (0) target = $region9
    $region8: #{tpu_custom_call.1} parent=1 // pred_region
      %s25 = ssub.s32 64, 64
      %26 = vsyncadd [#allocation6], %s25
      %s28 = sshll.u32 [#allocation5], 4
      %s29 = int_to_ptr.vmem [resolvable:$true] %s28
      %31 = dma.hbm_to_vmem [thread:$0]  %s1, 64, %s29, [#allocation6]
    $region9: #{tpu_custom_call.1} parent=1 // pred_fallthru
      _
    // Predicated region
    $region10: #{tpu_custom_call.1} parent=1 // pred_check
      _
    $region11: #{tpu_custom_call.1} parent=1 // pred_check_branch
      %33 = sbr.rel (0) target = $region13
    $region12: #{tpu_custom_call.1} parent=1 // pred_region
      %34 = dma.done [#allocation3], 2304
    $region13: #{tpu_custom_call.1} parent=1 // pred_fallthru
      _
    // Predicated region
    $region14: #{tpu_custom_call.1} parent=1 // pred_check
      _
    $region15: #{tpu_custom_call.1} parent=1 // pred_check_branch
      %36 = sbr.rel (0) target = $region17
    $region16: #{tpu_custom_call.1} parent=1 // pred_region
      %37 = dma.done [#allocation6], 64
    $region17: #{tpu_custom_call.1} parent=1 // pred_fallthru
      _
    %v38 = vld [vmem:[#allocation5] sm:$0xf]
    %v39 = vld [vmem:[#allocation2] sm:$0xff]
    %v40 = vld [vmem:[#allocation2 + $0x8] sm:$0xff]
    %v41 = vld [vmem:[#allocation2 + $0x10] sm:$0xff]
    %v42 = vld [vmem:[#allocation2 + $0x18] sm:$0xff]
    %v43 = vld [vmem:[#allocation2 + $0x20] sm:$0xff]
    %v44 = vld [vmem:[#allocation2 + $0x28] sm:$0xff]
    %v45 = vld [vmem:[#allocation2 + $0x30] sm:$0xff]
    %v46 = vld [vmem:[#allocation2 + $0x38] sm:$0xff]
    %v47 = vld [vmem:[#allocation2 + $0x40] sm:$0x7]
    %v48 = vld [vmem:[#allocation2 + $0x48] sm:$0xff]
    %v49 = vld [vmem:[#allocation2 + $0x50] sm:$0xff]
    %v50 = vld [vmem:[#allocation2 + $0x58] sm:$0xff]
    %v51 = vld [vmem:[#allocation2 + $0x60] sm:$0xff]
    %v52 = vld [vmem:[#allocation2 + $0x68] sm:$0xff]
    %v53 = vld [vmem:[#allocation2 + $0x70] sm:$0xff]
    %v54 = vld [vmem:[#allocation2 + $0x78] sm:$0xff]
    %v55 = vld [vmem:[#allocation2 + $0x80] sm:$0xff]
    %v56 = vld [vmem:[#allocation2 + $0x88] sm:$0x7]
    %58 = vset.pattern.permute.xlu0 0
    %59 = vperm.xlu0 %58, %v48
    %v60 = vpop.permute.xlu0 %59
    %63 = vset.pattern.permute.xlu0 0
    %64 = vperm.xlu0 %63, %v49
    %v65 = vpop.permute.xlu0 %64
    %68 = vset.pattern.permute.xlu0 0
    %69 = vperm.xlu0 %68, %v50
    %v70 = vpop.permute.xlu0 %69
    %73 = vset.pattern.permute.xlu0 0
    %74 = vperm.xlu0 %73, %v51
    %v75 = vpop.permute.xlu0 %74
    %vm77 = vcmask 31744
    %v79 = vsel %vm77, %v39, 0
    %v82 = vsel %vm77, %v40, 0
    %v85 = vsel %vm77, %v41, 0
    %v88 = vsel %vm77, %v42, 0
    %vm90 = vcmask 1043456
    %v92 = vsel %vm90, %v38, 0
    %94 = vmatprep.subr.mxu0 0.0
    %95 = vmatpush1.msra.mxu0 %v92
    %96 = vmatprep.subr.mxu0 0.0
    %97 = vmatpush1.msra.mxu0 0.0
    %98 = vmatprep.subr.mxu0 0.0
    %99 = vmatpush1.msra.mxu0 0.0
    %100 = vmatprep.subr.mxu0 0.0
    %101 = vmatpush1.msra.mxu0 0.0
    %102 = vmatprep.subr.mxu0 0.0
    %103 = vmatpush1.msra.mxu0 0.0
    %104 = vmatprep.subr.mxu0 0.0
    %105 = vmatpush1.msra.mxu0 0.0
    %106 = vmatprep.subr.mxu0 0.0
    %107 = vmatpush1.msra.mxu0 0.0
    %108 = vmatprep.subr.mxu0 0.0
    %109 = vmatpush1.msra.mxu0 0.0
    %110 = vmatprep.subr.mxu0 0.0
    %111 = vmatpush1.msra.mxu0 0.0
    %112 = vmatprep.subr.mxu0 0.0
    %113 = vmatpush1.msra.mxu0 0.0
    %114 = vmatprep.subr.mxu0 0.0
    %115 = vmatpush1.msra.mxu0 0.0
    %116 = vmatprep.subr.mxu0 0.0
    %117 = vmatpush1.msra.mxu0 0.0
    %118 = vmatprep.subr.mxu0 0.0
    %119 = vmatpush1.msra.mxu0 0.0
    %120 = vmatprep.subr.mxu0 0.0
    %121 = vmatpush1.msra.mxu0 0.0
    %122 = vmatprep.subr.mxu0 0.0
    %123 = vmatpush1.msra.mxu0 0.0
    %124 = vmatprep.subr.mxu0 0.0
    %125 = vmatpush1.msra.mxu0 0.0
    %126 = vmatprep.subr.mxu0 0.0
    %127 = vmatpush1.msra.mxu0 0.0
    %128 = vmatprep.subr.mxu0 0.0
    %129 = vmatpush1.msra.mxu0 0.0
    %130 = vmatprep.subr.mxu0 0.0
    %131 = vmatpush1.msra.mxu0 0.0
    %132 = vmatprep.subr.mxu0 0.0
    %133 = vmatpush1.msra.mxu0 0.0
    %134 = vmatprep.subr.mxu0 0.0
    %135 = vmatpush1.msra.mxu0 0.0
    %136 = vmatprep.subr.mxu0 0.0
    %137 = vmatpush1.msra.mxu0 0.0
    %138 = vmatprep.subr.mxu0 0.0
    %139 = vmatpush1.msra.mxu0 0.0
    %140 = vmatprep.subr.mxu0 0.0
    %141 = vmatpush1.msra.mxu0 0.0
    %142 = vmatprep.subr.mxu0 0.0
    %143 = vmatpush1.msra.mxu0 0.0
    %144 = vmatprep.subr.mxu0 0.0
    %145 = vmatpush1.msra.mxu0 0.0
    %146 = vmatprep.subr.mxu0 0.0
    %147 = vmatpush1.msra.mxu0 0.0
    %148 = vmatprep.subr.mxu0 0.0
    %149 = vmatpush1.msra.mxu0 0.0
    %150 = vmatprep.subr.mxu0 0.0
    %151 = vmatpush1.msra.mxu0 0.0
    %152 = vmatprep.subr.mxu0 0.0
    %153 = vmatpush1.msra.mxu0 0.0
    %154 = vmatprep.subr.mxu0 0.0
    %155 = vmatpush1.msra.mxu0 0.0
    %156 = vmatprep.subr.mxu0 0.0
    %157 = vmatpush1.msra.mxu0 0.0
    %158 = vmatprep.mubr.f32.mxu0 0.0
    %159 = vmatmul.mubr.f32.gmra.mrb[0].mxu0 %v79
    %v160 = vpop.f32.mrb[0].mxu0
    %v161 = vadd.f32 %v60, %v160
    %v162 = vpop.f32.mrb[0].mxu0
    %163 = vmatprep.mubr.f32.mxu0 0.0
    %164 = vmatmul.mubr.f32.gmra.mrb[0].mxu0 %v82
    %v165 = vpop.f32.mrb[0].mxu0
    %v166 = vadd.f32 %v65, %v165
    %v167 = vpop.f32.mrb[0].mxu0
    %168 = vmatprep.mubr.f32.mxu0 0.0
    %169 = vmatmul.mubr.f32.gmra.mrb[0].mxu0 %v85
    %v170 = vpop.f32.mrb[0].mxu0
    %v171 = vadd.f32 %v70, %v170
    %v172 = vpop.f32.mrb[0].mxu0
    %173 = vmatprep.mubr.f32.mxu0 0.0
    %174 = vmatmul.mubr.f32.gmra.mrb[0].mxu0 %v88
    %v175 = vpop.f32.mrb[0].mxu0
    %v176 = vadd.f32 %v75, %v175
    %v177 = vpop.f32.mrb[0].mxu0
    %178 = vdwg.mxu0
    %v179 = vmax.f32 %v161, 0.0
    %v180 = vmax.f32 %v166, 0.0
    %v181 = vmax.f32 %v171, 0.0
    %v182 = vmax.f32 %v176, 0.0
    %184 = vset.pattern.permute.xlu0 0
    %185 = vperm.xlu0 %184, %v52
    %v186 = vpop.permute.xlu0 %185
    %189 = vset.pattern.permute.xlu0 0
    %190 = vperm.xlu0 %189, %v53
    %v191 = vpop.permute.xlu0 %190
    %194 = vset.pattern.permute.xlu0 0
    %195 = vperm.xlu0 %194, %v54
    %v196 = vpop.permute.xlu0 %195
    %199 = vset.pattern.permute.xlu0 0
    %200 = vperm.xlu0 %199, %v55
    %v201 = vpop.permute.xlu0 %200
    %vm203 = vcmask 261120
    %v205 = vsel %vm203, %v43, 0
    %v208 = vsel %vm203, %v44, 0
    %v211 = vsel %vm203, %v45, 0
    %v214 = vsel %vm203, %v46, 0
    %216 = vmatprep.subr.mxu0 0.0
    %217 = vmatpush1.msra.mxu0 %v179
    %218 = vmatprep.subr.mxu0 0.0
    %219 = vmatpush1.msra.mxu0 %v180
    %220 = vmatprep.subr.mxu0 0.0
    %221 = vmatpush1.msra.mxu0 %v181
    %222 = vmatprep.subr.mxu0 0.0
    %223 = vmatpush1.msra.mxu0 %v182
    %224 = vmatprep.subr.mxu0 0.0
    %225 = vmatpush1.msra.mxu0 0.0
    %226 = vmatprep.subr.mxu0 0.0
    %227 = vmatpush1.msra.mxu0 0.0
    %228 = vmatprep.subr.mxu0 0.0
    %229 = vmatpush1.msra.mxu0 0.0
    %230 = vmatprep.subr.mxu0 0.0
    %231 = vmatpush1.msra.mxu0 0.0
    %232 = vmatprep.subr.mxu0 0.0
    %233 = vmatpush1.msra.mxu0 0.0
    %234 = vmatprep.subr.mxu0 0.0
    %235 = vmatpush1.msra.mxu0 0.0
    %236 = vmatprep.subr.mxu0 0.0
    %237 = vmatpush1.msra.mxu0 0.0
    %238 = vmatprep.subr.mxu0 0.0
    %239 = vmatpush1.msra.mxu0 0.0
    %240 = vmatprep.subr.mxu0 0.0
    %241 = vmatpush1.msra.mxu0 0.0
    %242 = vmatprep.subr.mxu0 0.0
    %243 = vmatpush1.msra.mxu0 0.0
    %244 = vmatprep.subr.mxu0 0.0
    %245 = vmatpush1.msra.mxu0 0.0
    %246 = vmatprep.subr.mxu0 0.0
    %247 = vmatpush1.msra.mxu0 0.0
    %248 = vmatprep.subr.mxu0 0.0
    %249 = vmatpush1.msra.mxu0 0.0
    %250 = vmatprep.subr.mxu0 0.0
    %251 = vmatpush1.msra.mxu0 0.0
    %252 = vmatprep.subr.mxu0 0.0
    %253 = vmatpush1.msra.mxu0 0.0
    %254 = vmatprep.subr.mxu0 0.0
    %255 = vmatpush1.msra.mxu0 0.0
    %256 = vmatprep.subr.mxu0 0.0
    %257 = vmatpush1.msra.mxu0 0.0
    %258 = vmatprep.subr.mxu0 0.0
    %259 = vmatpush1.msra.mxu0 0.0
    %260 = vmatprep.subr.mxu0 0.0
    %261 = vmatpush1.msra.mxu0 0.0
    %262 = vmatprep.subr.mxu0 0.0
    %263 = vmatpush1.msra.mxu0 0.0
    %264 = vmatprep.subr.mxu0 0.0
    %265 = vmatpush1.msra.mxu0 0.0
    %266 = vmatprep.subr.mxu0 0.0
    %267 = vmatpush1.msra.mxu0 0.0
    %268 = vmatprep.subr.mxu0 0.0
    %269 = vmatpush1.msra.mxu0 0.0
    %270 = vmatprep.subr.mxu0 0.0
    %271 = vmatpush1.msra.mxu0 0.0
    %272 = vmatprep.subr.mxu0 0.0
    %273 = vmatpush1.msra.mxu0 0.0
    %274 = vmatprep.subr.mxu0 0.0
    %275 = vmatpush1.msra.mxu0 0.0
    %276 = vmatprep.subr.mxu0 0.0
    %277 = vmatpush1.msra.mxu0 0.0
    %278 = vmatprep.subr.mxu0 0.0
    %279 = vmatpush1.msra.mxu0 0.0
    %280 = vmatprep.mubr.f32.mxu0 0.0
    %281 = vmatmul.mubr.f32.gmra.mrb[0].mxu0 %v205
    %v282 = vpop.f32.mrb[0].mxu0
    %v283 = vadd.f32 %v186, %v282
    %v284 = vpop.f32.mrb[0].mxu0
    %285 = vmatprep.mubr.f32.mxu0 0.0
    %286 = vmatmul.mubr.f32.gmra.mrb[0].mxu0 %v208
    %v287 = vpop.f32.mrb[0].mxu0
    %v288 = vadd.f32 %v191, %v287
    %v289 = vpop.f32.mrb[0].mxu0
    %290 = vmatprep.mubr.f32.mxu0 0.0
    %291 = vmatmul.mubr.f32.gmra.mrb[0].mxu0 %v211
    %v292 = vpop.f32.mrb[0].mxu0
    %v293 = vadd.f32 %v196, %v292
    %v294 = vpop.f32.mrb[0].mxu0
    %295 = vmatprep.mubr.f32.mxu0 0.0
    %296 = vmatmul.mubr.f32.gmra.mrb[0].mxu0 %v214
    %v297 = vpop.f32.mrb[0].mxu0
    %v298 = vadd.f32 %v201, %v297
    %v299 = vpop.f32.mrb[0].mxu0
    %300 = vdwg.mxu0
    %v301 = vmax.f32 %v283, 0.0
    %v302 = vmax.f32 %v288, 0.0
    %v303 = vmax.f32 %v293, 0.0
    %v304 = vmax.f32 %v298, 0.0
    %306 = vset.pattern.permute.xlu0 0
    %307 = vperm.xlu0 %306, %v56
    %v308 = vpop.permute.xlu0 %307
    %v311 = vsel %vm203, %v47, 0
    %313 = vmatprep.subr.mxu0 0.0
    %314 = vmatpush1.msra.mxu0 %v301
    %315 = vmatprep.subr.mxu0 0.0
    %316 = vmatpush1.msra.mxu0 %v302
    %317 = vmatprep.subr.mxu0 0.0
    %318 = vmatpush1.msra.mxu0 %v303
    %319 = vmatprep.subr.mxu0 0.0
    %320 = vmatpush1.msra.mxu0 %v304
    %321 = vmatprep.subr.mxu0 0.0
    %322 = vmatpush1.msra.mxu0 0.0
    %323 = vmatprep.subr.mxu0 0.0
    %324 = vmatpush1.msra.mxu0 0.0
    %325 = vmatprep.subr.mxu0 0.0
    %326 = vmatpush1.msra.mxu0 0.0
    %327 = vmatprep.subr.mxu0 0.0
    %328 = vmatpush1.msra.mxu0 0.0
    %329 = vmatprep.subr.mxu0 0.0
    %330 = vmatpush1.msra.mxu0 0.0
    %331 = vmatprep.subr.mxu0 0.0
    %332 = vmatpush1.msra.mxu0 0.0
    %333 = vmatprep.subr.mxu0 0.0
    %334 = vmatpush1.msra.mxu0 0.0
    %335 = vmatprep.subr.mxu0 0.0
    %336 = vmatpush1.msra.mxu0 0.0
    %337 = vmatprep.subr.mxu0 0.0
    %338 = vmatpush1.msra.mxu0 0.0
    %339 = vmatprep.subr.mxu0 0.0
    %340 = vmatpush1.msra.mxu0 0.0
    %341 = vmatprep.subr.mxu0 0.0
    %342 = vmatpush1.msra.mxu0 0.0
    %343 = vmatprep.subr.mxu0 0.0
    %344 = vmatpush1.msra.mxu0 0.0
    %345 = vmatprep.subr.mxu0 0.0
    %346 = vmatpush1.msra.mxu0 0.0
    %347 = vmatprep.subr.mxu0 0.0
    %348 = vmatpush1.msra.mxu0 0.0
    %349 = vmatprep.subr.mxu0 0.0
    %350 = vmatpush1.msra.mxu0 0.0
    %351 = vmatprep.subr.mxu0 0.0
    %352 = vmatpush1.msra.mxu0 0.0
    %353 = vmatprep.subr.mxu0 0.0
    %354 = vmatpush1.msra.mxu0 0.0
    %355 = vmatprep.subr.mxu0 0.0
    %356 = vmatpush1.msra.mxu0 0.0
    %357 = vmatprep.subr.mxu0 0.0
    %358 = vmatpush1.msra.mxu0 0.0
    %359 = vmatprep.subr.mxu0 0.0
    %360 = vmatpush1.msra.mxu0 0.0
    %361 = vmatprep.subr.mxu0 0.0
    %362 = vmatpush1.msra.mxu0 0.0
    %363 = vmatprep.subr.mxu0 0.0
    %364 = vmatpush1.msra.mxu0 0.0
    %365 = vmatprep.subr.mxu0 0.0
    %366 = vmatpush1.msra.mxu0 0.0
    %367 = vmatprep.subr.mxu0 0.0
    %368 = vmatpush1.msra.mxu0 0.0
    %369 = vmatprep.subr.mxu0 0.0
    %370 = vmatpush1.msra.mxu0 0.0
    %371 = vmatprep.subr.mxu0 0.0
    %372 = vmatpush1.msra.mxu0 0.0
    %373 = vmatprep.subr.mxu0 0.0
    %374 = vmatpush1.msra.mxu0 0.0
    %375 = vmatprep.subr.mxu0 0.0
    %376 = vmatpush1.msra.mxu0 0.0
    %377 = vmatprep.mubr.f32.mxu0 0.0
    %378 = vmatmul.mubr.f32.gmra.mrb[0].mxu0 %v311
    %v379 = vpop.f32.mrb[0].mxu0
    %v380 = vadd.f32 %v308, %v379
    %v381 = vpop.f32.mrb[0].mxu0
    %382 = vdwg.mxu0
    %vm383 = vcmask 1041408
    %v384 = vsel %vm383, %v380, 0.0
    %v385 = vrot.slane %v384, 4
    %v386 = vadd.f32 %v384, %v385
    %v387 = vrot.slane %v386, 2
    %v388 = vadd.f32 %v386, %v387
    %v389 = vrot.slane %v388, 1
    %v390 = vadd.f32 %v388, %v389
    %v391 = vmul.f32 %v390, 0.5
    %v392 = vlaneseq
    %v393 = vshrl.u32 %v392, 7
    %v394 = vsub.s32 2, %v393
    %v395 = vrot.slane %v380, %v394
    %v396 = vadd.f32 %v395, %v380
    %v397 = vsub.f32 %v396, %v391
    %398 = vst [vmem:[#allocation7] sm:$0x3] %v397
    // Predicated region
    $region18: #{tpu_custom_call.1} parent=1 // pred_check
      _
    $region19: #{tpu_custom_call.1} parent=1 // pred_check_branch
      %400 = sbr.rel (0) target = $region21
    $region20: #{tpu_custom_call.1} parent=1 // pred_region
      %s402 = ssub.s32 32, 32
      %403 = vsyncadd [#allocation4], %s402
      %s405 = sshll.u32 [#allocation7], 4
      %s406 = int_to_ptr.vmem [resolvable:$true] %s405
      %408 = dma.vmem_to_hbm [thread:$0]  %s406, 32, %s2, [#allocation4]
    $region21: #{tpu_custom_call.1} parent=1 // pred_fallthru
      _
    // Predicated region
    $region22: #{tpu_custom_call.1} parent=1 // pred_check
      _
    $region23: #{tpu_custom_call.1} parent=1 // pred_check_branch
      %410 = sbr.rel (0) target = $region25
    $region24: #{tpu_custom_call.1} parent=1 // pred_region
      %411 = dma.done [#allocation4], 32
    $region25: #{tpu_custom_call.1} parent=1 // pred_fallthru
      _
    %412 = vsyncpa [#allocation3], 1
    %413 = vsyncpa [#allocation6], 1
    %414 = vsyncpa [#allocation4], 1

</llo_original>
